<compile_context>
chip_gen: v6e
topology: v6e:2x2x1
jax: 0.10.0
libtpu: 0.0.40
codegen_flags: <defaults>
</compile_context>

<pallas_src>
import functools

import jax
import jax.numpy as jnp
from jax.experimental import pallas as pl
from jax.experimental.pallas import tpu as pltpu

# Deterministic "general_configs" (synthetic — not loaded from a checkpoint).
GENERAL_CONFIGS = {
    "REACTION_TIME": 0.5,   # tau [s]
    "MAX_ACCEL": 3.0,       # [m/s^2]
    "MAX_BRAKE": 8.0,       # [m/s^2]
    "MIN_BRAKE": 4.0,       # [m/s^2]
    "CAR_LENGTH": 4.5,      # [m]
}

_LANE = 128
# Fixed tile buckets (rows of 128 lanes): 1K, 8K, 32K, 128K batch lanes/step.
# Largest bucket: in-block 4*1024*128*4 B = 2 MiB + out-block 0.5 MiB ->
# ~5 MiB double-buffered.  Fixed buckets avoid a fresh Mosaic tuning point per
# distinct batch size.
_TILE_R_BUCKETS = (8, 64, 256, 1024)

# Crossover for the AoS [B, 4] interface only: below this the fused pure-jnp
# path wins (pallas_call fixed overhead + the AoS->SoA transpose dominate).
# TODO(synk): re-benchmark per generation; the SoA path wins much earlier.
_MIN_PALLAS_B = 32_768


def _folded_constants():
    """Fold the d_min polynomial into d_min = A + vr*(B + C*vr) + D*vf^2."""
    tau = float(GENERAL_CONFIGS["REACTION_TIME"])
    a = float(GENERAL_CONFIGS["MAX_ACCEL"])
    min_brake = float(GENERAL_CONFIGS["MIN_BRAKE"])
    max_brake = float(GENERAL_CONFIGS["MAX_BRAKE"])
    car_len = float(GENERAL_CONFIGS["CAR_LENGTH"])
    c_a = car_len + 0.5 * a * tau * tau + 0.5 * (tau * a) ** 2 / min_brake
    c_b = tau * (1.0 + a / min_brake)
    c_c = 0.5 / min_brake
    c_d = 0.5 / max_brake
    return c_a, c_b, c_c, c_d


def _rss_cbf_kernel(data_ref, h_ref, *, c_a, c_b, c_c, c_d):
    # data_ref: [4, TILE_R, 128]  channel-major, sublane+lane dense
    # h_ref:    [TILE_R, 128]     lane-dense output slab (unmasked vst)
    xf = data_ref[0]
    xr = data_ref[1]
    vf = data_ref[2]
    vr = data_ref[3]
    d_min = c_a + vr * (c_b + c_c * vr) + c_d * (vf * vf)
    d_min = jnp.maximum(d_min, 0.0)          # relu
    h_ref[...] = xf - xr - d_min


def _pick_tile_r(num_rows):
    """Pick a bucketed tile (rows of 128 lanes) giving >= 2 grid steps."""
    if num_rows <= _TILE_R_BUCKETS[0]:
        # Tiny input: one block exactly covering the array (block dim == full
        # array dim satisfies the (8, 128) rule).
        return num_rows
    for t in reversed(_TILE_R_BUCKETS):
        if 2 * t <= num_rows:                # >= 2 steps: pipelining + v7x TCs
            return t
    return _TILE_R_BUCKETS[0]


def rss_cbf_soa(data_soa: jax.Array) -> jax.Array:
    """Preferred entry point.  data_soa: [4, B] channel-major -> h: [B]."""
    assert data_soa.ndim == 2 and data_soa.shape[0] == 4, data_soa.shape
    B = data_soa.shape[1]
    b_pad = pl.cdiv(B, _LANE) * _LANE
    x = data_soa
    if b_pad != B:
        # Pad only to the 128-lane granule so the [4, R, 128] view is a free
        # contiguous reshape.  No padding to a tile multiple: the grid uses
        # cdiv + Pallas edge-block handling instead.
        x = jnp.pad(x, ((0, 0), (0, b_pad - B)))
    num_rows = b_pad // _LANE
    x3 = x.reshape(4, num_rows, _LANE)       # free (contiguous) reshape
    tile_r = _pick_tile_r(num_rows)

    c_a, c_b, c_c, c_d = _folded_constants()
    kernel = functools.partial(_rss_cbf_kernel,
                               c_a=c_a, c_b=c_b, c_c=c_c, c_d=c_d)

    h2 = pl.pallas_call(
        kernel,
        out_shape=jax.ShapeDtypeStruct((num_rows, _LANE), data_soa.dtype),
        grid_spec=pltpu.PrefetchScalarGridSpec(
            num_scalar_prefetch=0,
            grid=(pl.cdiv(num_rows, tile_r),),
            in_specs=[pl.BlockSpec((4, tile_r, _LANE), lambda i: (0, i, 0))],
            out_specs=pl.BlockSpec((tile_r, _LANE), lambda i: (i, 0)),
        ),
        compiler_params=pltpu.CompilerParams(
            dimension_semantics=("parallel",)),
        # NOTE: double-buffered footprint <= ~5 MiB at the largest bucket, so
        # the default scoped-VMEM limit is fine on v5e/v6e/v7x.
    )(x3)

    h = h2.reshape(b_pad)
    return h if b_pad == B else h[:B]


def rss_cbf_ref(data: jax.Array) -> jax.Array:
    """Pure-JAX reference mirroring the PyTorch forward (AoS [B, 4])."""
    xf, xr, vf, vr = data[:, 0], data[:, 1], data[:, 2], data[:, 3]
    tau = GENERAL_CONFIGS["REACTION_TIME"]
    d_min = GENERAL_CONFIGS["CAR_LENGTH"]
    d_min = d_min + vr * tau
    d_min = d_min + 0.5 * GENERAL_CONFIGS["MAX_ACCEL"] * tau ** 2
    d_min = d_min + 0.5 / GENERAL_CONFIGS["MIN_BRAKE"] * (
        vr + tau * GENERAL_CONFIGS["MAX_ACCEL"]) ** 2
    d_min = d_min + 0.5 / GENERAL_CONFIGS["MAX_BRAKE"] * vf ** 2
    d_min = jnp.maximum(d_min, 0.0)
    return xf - xr - d_min


def rss_cbf(data: jax.Array, *, force_pallas: bool = False) -> jax.Array:
    """Module-compatible interface.  data: [B, 4] (AoS) -> h: [B]."""
    assert data.ndim == 2 and data.shape[1] == 4, data.shape
    B = data.shape[0]
    if not force_pallas and B < _MIN_PALLAS_B:
        # Small batches: the fused XLA path is already at the HBM roofline.
        return rss_cbf_ref(data)
    # TODO(synk): this transpose is one extra HBM pass over the input; have
    # the producer emit the SoA [4, B] layout and call rss_cbf_soa directly
    # (an in-kernel AoS de-interleave via XLU roll / MXU compaction would
    # remove it too, but is not implemented here for precision safety).
    return rss_cbf_soa(data.T)


if __name__ == "__main__":
    key = jax.random.PRNGKey(0)
    k_pos, k_vel = jax.random.split(key)

    # Small, module-consistent shape: B records of
    # [x_front, x_rear, v_front, v_rear].
    B = 8
    positions = jax.random.uniform(k_pos, (B, 2), jnp.float32, 0.0, 50.0)
    velocities = jax.random.uniform(k_vel, (B, 2), jnp.float32, 0.0, 20.0)
    data = jnp.concatenate([positions, velocities], axis=1)   # [B, 4]

    # 1) Module-compatible AoS entry, forced through the Pallas path
    #    (exercises 128-lane granule padding + a single exact block).
    h = rss_cbf(data, force_pallas=True)
    jax.block_until_ready(h)
    h_ref = rss_cbf_ref(data)
    assert h.shape == (B,), h.shape
    assert jnp.allclose(h, h_ref, atol=1e-4, rtol=1e-4), (h, h_ref)

    # 2) Preferred SoA entry at a batch that is a multiple of 128
    #    (exercises the no-pad path and a multi-step, double-buffered grid).
    B2 = 2048
    k1, k2 = jax.random.split(k_vel)
    pos2 = jax.random.uniform(k1, (B2, 2), jnp.float32, 0.0, 50.0)
    vel2 = jax.random.uniform(k2, (B2, 2), jnp.float32, 0.0, 20.0)
    data2 = jnp.concatenate([pos2, vel2], axis=1)              # [B2, 4]
    h2 = rss_cbf_soa(data2.T)                                  # SoA [4, B2]
    jax.block_until_ready(h2)
    h2_ref = rss_cbf_ref(data2)
    assert h2.shape == (B2,), h2.shape
    assert jnp.allclose(h2, h2_ref, atol=1e-4, rtol=1e-4), (h2, h2_ref)

    print("KERNEL_OK")
</pallas_src>

<mosaic_0001>
module attributes {stable_mosaic.version = 11 : i64} {
  func.func @_rss_cbf_kernel(%arg0: i32, %arg1: memref<4x1x128xf32, #tpu.memory_space<vmem>>, %arg2: memref<1x128xf32, #tpu.memory_space<vmem>>) attributes {dimension_semantics = [#tpu.dimension_semantics<parallel>], iteration_bounds = array<i64: 1>, scalar_prefetch = 0 : i64, scratch_operands = 0 : i64, tpu.core_type = #tpu.core_type<tc>, window_params = [{transform_indices = @transform_0, window_bounds = array<i64: 4, 1, 128>}, {transform_indices = @transform_1, window_bounds = array<i64: 1, 128>}]} {
    %c0 = arith.constant 0 : index
    %c0_0 = arith.constant 0 : index
    %c0_1 = arith.constant 0 : index
    %0 = vector.load %arg1[%c0, %c0_0, %c0_1] : memref<4x1x128xf32, #tpu.memory_space<vmem>>, vector<1x1x128xf32>
    %1 = vector.shape_cast %0 : vector<1x1x128xf32> to vector<1x128xf32>
    %c1 = arith.constant 1 : index
    %c0_2 = arith.constant 0 : index
    %c0_3 = arith.constant 0 : index
    %2 = vector.load %arg1[%c1, %c0_2, %c0_3] : memref<4x1x128xf32, #tpu.memory_space<vmem>>, vector<1x1x128xf32>
    %3 = vector.shape_cast %2 : vector<1x1x128xf32> to vector<1x128xf32>
    %c2 = arith.constant 2 : index
    %c0_4 = arith.constant 0 : index
    %c0_5 = arith.constant 0 : index
    %4 = vector.load %arg1[%c2, %c0_4, %c0_5] : memref<4x1x128xf32, #tpu.memory_space<vmem>>, vector<1x1x128xf32>
    %5 = vector.shape_cast %4 : vector<1x1x128xf32> to vector<1x128xf32>
    %c3 = arith.constant 3 : index
    %c0_6 = arith.constant 0 : index
    %c0_7 = arith.constant 0 : index
    %6 = vector.load %arg1[%c3, %c0_6, %c0_7] : memref<4x1x128xf32, #tpu.memory_space<vmem>>, vector<1x1x128xf32>
    %7 = vector.shape_cast %6 : vector<1x1x128xf32> to vector<1x128xf32>
    %cst = arith.constant 1.250000e-01 : f32
    %8 = vector.broadcast %cst : f32 to vector<1x128xf32>
    %9 = arith.mulf %8, %7 : vector<1x128xf32>
    %cst_8 = arith.constant 8.750000e-01 : f32
    %10 = vector.broadcast %cst_8 : f32 to vector<1x128xf32>
    %11 = arith.addf %10, %9 : vector<1x128xf32>
    %12 = arith.mulf %7, %11 : vector<1x128xf32>
    %cst_9 = arith.constant 5.156250e+00 : f32
    %13 = vector.broadcast %cst_9 : f32 to vector<1x128xf32>
    %14 = arith.addf %13, %12 : vector<1x128xf32>
    %15 = arith.mulf %5, %5 : vector<1x128xf32>
    %cst_10 = arith.constant 6.250000e-02 : f32
    %16 = vector.broadcast %cst_10 : f32 to vector<1x128xf32>
    %17 = arith.mulf %16, %15 : vector<1x128xf32>
    %18 = arith.addf %14, %17 : vector<1x128xf32>
    %cst_11 = arith.constant 0.000000e+00 : f32
    %19 = vector.broadcast %cst_11 : f32 to vector<1x128xf32>
    %20 = arith.maximumf %18, %19 : vector<1x128xf32>
    %21 = arith.subf %1, %3 : vector<1x128xf32>
    %22 = arith.subf %21, %20 : vector<1x128xf32>
    %c0_12 = arith.constant 0 : index
    %c0_13 = arith.constant 0 : index
    %23 = vector.load %arg2[%c0_12, %c0_13] : memref<1x128xf32, #tpu.memory_space<vmem>>, vector<1x128xf32>
    tpu.vector_store %arg2[%c0_12, %c0_13], %22 {strides = array<i32>} : memref<1x128xf32, #tpu.memory_space<vmem>>, vector<1x128xf32>,
    return
  }
  func.func @transform_0(%arg0: i32) -> (i32, i32, i32) {
    %c0_i32 = arith.constant 0 : i32
    %c0_i32_0 = arith.constant 0 : i32
    %c0_i32_1 = arith.constant 0 : i32
    return %c0_i32, %arg0, %c0_i32_0 : i32, i32, i32
  }
  func.func @transform_1(%arg0: i32) -> (i32, i32) {
    %c0_i32 = arith.constant 0 : i32
    %c0_i32_0 = arith.constant 0 : i32
    return %arg0, %c0_i32 : i32, i32
  }
}

</mosaic_0001>

<llo_original>
// kernel: tpu_custom_call.1
$region0: #{tpu_custom_call.1}
  #allocation0 [shape = 'u32[]', space=smem, size = 0x4, offset = 0x4, fixed_abs, tag = 'smem constant byte address 0x4 - core index']
  #allocation1 [shape = 'u32[144,128]{1,0:T(1,128)}', space=vmem, size = 0x12000, scoped, tag = 'internal scratch']
  %s0 = inlined_call_operand.hbm [shape: f32[4,1,128], index: 0, kind: input, shape index: {}]
  %s1 = inlined_call_operand.hbm [shape: f32[1,128], index: 1, kind: output, shape index: {}]
  %s2 = sld [smem:[#allocation0]]
  $region18: #{tpu_custom_call.1} parent=0
    _
  %s4 = ssub.s32 1, %s2
  %s5 = scalar_select 0, %s4, %s2
  $region1: #{tpu_custom_call.1} parent=0
    #allocation2 [shape = 'u8[2048]{0}', space=vmem, size = 0x800, scoped, tag = 'input window, operand 0, single buffered']
    #allocation3 [shape = 's32[1]{0}', space=sflag, size = 0x4, scoped, tag = 'scoped memory for tpu_custom_call.1']
    #allocation4 [shape = 's32[1]{0}', space=sflag, size = 0x4, scoped, tag = 'scoped memory for tpu_custom_call.1']
    #allocation5 [shape = 'u8[512]{0}', space=vmem, size = 0x400, scoped, tag = 'output window, operand 0, single buffered']
    %6 = vsyncpa [#allocation3], 0
    %7 = vsyncpa [#allocation4], 0
    // Predicated region
    $region2: #{tpu_custom_call.1} parent=1 // pred_check
      _
    $region3: #{tpu_custom_call.1} parent=1 // pred_check_branch
      %9 = sbr.rel (0) target = $region5
    $region4: #{tpu_custom_call.1} parent=1 // pred_region
      %s11 = ssub.s32 64, 64
      %12 = vsyncadd [#allocation3], %s11
      %s13 = sshll.u32 [#allocation2], 4
      %s14 = int_to_ptr.vmem [resolvable:$true] %s13
      %19 = dma.hbm_to_vmem [thread:$0]  %s0, 64, %s14, [#allocation3], 16, 16, 1
    $region5: #{tpu_custom_call.1} parent=1 // pred_fallthru
      _
    // Predicated region
    $region6: #{tpu_custom_call.1} parent=1 // pred_check
      _
    $region7: #{tpu_custom_call.1} parent=1 // pred_check_branch
      %21 = sbr.rel (0) target = $region9
    $region8: #{tpu_custom_call.1} parent=1 // pred_region
      %22 = dma.done [#allocation3], 64
    $region9: #{tpu_custom_call.1} parent=1 // pred_fallthru
      _
    %v23 = vld [vmem:[#allocation2] sm:$0x1]
    %s24 = scalar_lea.vmem [#allocation2], 1
    %v25 = vld [vmem:[%s24] sm:$0x1]
    %s26 = scalar_lea.vmem [#allocation2], 2
    %v27 = vld [vmem:[%s26] sm:$0x1]
    %s28 = scalar_lea.vmem [#allocation2], 3
    %v29 = vld [vmem:[%s28] sm:$0x1]
    %v30 = vmul.f32 %v29, 0.125
    %v31 = vadd.f32 %v30, 0.875
    %v32 = vmul.f32 %v29, %v31
    %v33 = vadd.f32 %v32, 5.15625
    %v34 = vmul.f32 %v27, %v27
    %v35 = vmul.f32 %v34, 0.0625
    %v36 = vadd.f32 %v33, %v35
    %v37 = vmax.f32 %v36, 0.0
    %v38 = vsub.f32 %v23, %v25
    %v39 = vsub.f32 %v38, %v37
    %40 = vst [vmem:[#allocation5] sm:$0x1] %v39
    // Predicated region
    $region10: #{tpu_custom_call.1} parent=1 // pred_check
      _
    $region11: #{tpu_custom_call.1} parent=1 // pred_check_branch
      %42 = sbr.rel (0) target = $region13
    $region12: #{tpu_custom_call.1} parent=1 // pred_region
      %s44 = ssub.s32 16, 16
      %45 = vsyncadd [#allocation4], %s44
      %s47 = sshll.u32 [#allocation5], 4
      %s48 = int_to_ptr.vmem [resolvable:$true] %s47
      %50 = dma.vmem_to_hbm [thread:$0]  %s48, 16, %s1, [#allocation4]
    $region13: #{tpu_custom_call.1} parent=1 // pred_fallthru
      _
    // Predicated region
    $region14: #{tpu_custom_call.1} parent=1 // pred_check
      _
    $region15: #{tpu_custom_call.1} parent=1 // pred_check_branch
      %52 = sbr.rel (0) target = $region17
    $region16: #{tpu_custom_call.1} parent=1 // pred_region
      %53 = dma.done [#allocation4], 16
    $region17: #{tpu_custom_call.1} parent=1 // pred_fallthru
      _
    %54 = vsyncpa [#allocation3], 1
    %55 = vsyncpa [#allocation4], 1

</llo_original>
